<compile_context>
chip_gen: v7x
topology: tpu7x:2x2x1
jax: 0.10.0
libtpu: 0.0.40
codegen_flags: <defaults>
</compile_context>

<pallas_src>
import jax
import jax.numpy as jnp
from jax import lax
from jax.experimental import pallas as pl
from jax.experimental.pallas import tpu as pltpu


def _wrm_kernel(k_ref, w_ref, pred_ref, emb_ref, out_ref):
    # k_ref   : SMEM (B,)   int32 — codebook index per row
    # w_ref   : VMEM (1, D) f32   — raw weight parameter
    # pred_ref: VMEM (B, D) f32
    # emb_ref : VMEM (K, D) f32
    # out_ref : SMEM (2,)   f32   — [mean(pdist), diffargmin]
    w = w_ref[...]                                    # (1, D)
    pred = pred_ref[...]                              # (B, D)
    emb = emb_ref[...]                                # (K, D)
    D = w.shape[1]
    B = pred.shape[0]
    K = emb.shape[0]

    # ---- transWeight(): standardize (unbiased var, like torch.var) + sigmoid(7x) ----
    # rsqrt + sigmoid keep the transcendental work on the EUP slot.
    mean_w = jnp.mean(w)
    var_w = jnp.sum((w - mean_w) ** 2) * jnp.float32(1.0 / (D - 1))
    z = (w - mean_w) * lax.rsqrt(var_w + 1e-5)
    wt = jax.nn.sigmoid(7.0 * z)                      # (1, D)
    wt2 = wt * wt                                     # (1, D) weight folded once

    inv_D = jnp.float32(1.0 / D)                      # D = 128 -> exact reciprocal
    dn = (((1,), (1,)), ((), ()))                     # contract last dims ("NT" matmul)

    # Main MXU push: weighted cross term, (B, D) x (D, K).
    cross = lax.dot_general(pred * wt2, emb, dn,
                            preferred_element_type=jnp.float32)          # (B, K)

    # Single extra MXU push fusing BOTH norm reductions:
    #   LHS rows 0..B-1 = pred^2, row B = wt2
    #   RHS rows 0..K-1 = emb^2,  row K = wt2
    #   => pred_norm[b] = norms[b, K],  emb_norm[j] = norms[B, j]
    norms_lhs = jnp.concatenate([pred * pred, wt2], axis=0)              # (B+1, D)
    norms_rhs = jnp.concatenate([emb * emb, wt2], axis=0)                # (K+1, D)
    norms = lax.dot_general(norms_lhs, norms_rhs, dn,
                            preferred_element_type=jnp.float32)          # (B+1, K+1)
    pred_norm = norms[0:B, K:K + 1]                                      # (B, 1)
    emb_norm = norms[B:B + 1, 0:K]                                       # (1, K)

    # Gram identity; clamp tiny negatives from cancellation (the torch
    # subtract-square form is always >= 0).
    allDist = jnp.maximum((pred_norm + emb_norm - 2.0 * cross) * inv_D, 0.0)  # (B, K)

    # pdist[b] = allDist[b, k[b]] via one-hot gather -> diff[b, k[b]] == 0 exactly.
    # k lives in SMEM: B scalar reads, each compared against a lane iota row.
    col = lax.broadcasted_iota(jnp.int32, (1, K), 1)
    onehot = jnp.concatenate(
        [(col == k_ref[b]).astype(jnp.float32) for b in range(B)], axis=0)   # (B, K)
    pdist = jnp.sum(allDist * onehot, axis=1, keepdims=True)                  # (B, 1)

    # diff = pdist - allDist ; mean over the entries with diff >= 0 (fused num/count).
    diff = pdist - allDist                            # (B, K)
    num = jnp.sum(jnp.maximum(diff, 0.0))             # sum over selected entries
    cnt = jnp.sum((diff >= 0.0).astype(jnp.float32))  # always >= B (the k entries)

    out_ref[0] = jnp.sum(pdist) * jnp.float32(1.0 / B)   # mean(pdist)
    out_ref[1] = num / cnt                               # diffargmin


def weight_regression_forward(predict_latent, k, weight, embeds):
    """Returns (mean(pdist), diffargmin) as float32 scalars."""
    B, D = predict_latent.shape
    K = embeds.shape[0]
    k1d = k.astype(jnp.int32).reshape(B)
    w2 = weight.astype(jnp.float32).reshape(1, D)

    flops = 2 * B * K * D + 2 * (B + 1) * (K + 1) * D + 8 * B * K
    bytes_accessed = 4 * (B * D + K * D + D + B + 2)

    out = pl.pallas_call(
        _wrm_kernel,
        out_shape=jax.ShapeDtypeStruct((2,), jnp.float32),
        # No grid: at (B=8, K=512, D=128) all operands (~266 KiB) fit in VMEM in a
        # single invocation.  Explicit memory spaces: k -> SMEM (scalar indices),
        # weight / predict_latent / embeds -> VMEM, scalar results -> SMEM.
        in_specs=[
            pl.BlockSpec(memory_space=pltpu.MemorySpace.SMEM),   # k
            pl.BlockSpec(memory_space=pltpu.MemorySpace.VMEM),   # weight
            pl.BlockSpec(memory_space=pltpu.MemorySpace.VMEM),   # predict_latent
            pl.BlockSpec(memory_space=pltpu.MemorySpace.VMEM),   # embeds
        ],
        out_specs=pl.BlockSpec(memory_space=pltpu.MemorySpace.SMEM),
        cost_estimate=pl.CostEstimate(
            flops=flops, transcendentals=D, bytes_accessed=bytes_accessed),
        # TODO(synk): for B >= ~128, put B on a "parallel" grid axis (tile_B=256 on
        # v6e/v7x to fill the 256-wide MXU, 128 on v5e), keep the embeds BlockSpec
        # index_map constant so the codebook stays VMEM-resident, accumulate the
        # scalar sums in scratch with pl.when init/finalize, and tile K on an
        # "arbitrary" axis once K*D*4 (double-buffered) approaches v7x's ~32 MiB
        # scoped VMEM.
        # TODO(synk): optionally feed the cross matmul in bf16 (cast pred*wt2 and
        # embeds, keep f32 accumulation) to halve the embeds HBM read on v6e/v7x;
        # kept f32 here to preserve exact fidelity at the diff >= 0 threshold.
    )(k1d, w2, predict_latent.astype(jnp.float32), embeds.astype(jnp.float32))
    return out[0], out[1]


def _reference(predict_latent, k, weight, embeds):
    # Pure-JAX mirror of the PyTorch forward.  pdist is taken as allDist[b, k[b]]
    # (mathematically identical to mean((pred*wt - embeds[k]*wt)**2, axis=1)),
    # which pins diff[b, k[b]] to exactly 0 so the >=0 selection is unambiguous.
    D = weight.shape[0]
    B = predict_latent.shape[0]
    mean_w = jnp.mean(weight)
    var_w = jnp.sum((weight - mean_w) ** 2) / (D - 1)
    wt = 1.0 / (1.0 + jnp.exp(-7.0 * (weight - mean_w) / jnp.sqrt(var_w + 1e-5)))
    allDist = jnp.mean(
        (predict_latent[:, None, :] * wt - embeds[None, :, :] * wt) ** 2, axis=2)
    pdist = allDist[jnp.arange(B), k]
    diff = pdist[:, None] - allDist
    sel = diff >= 0.0
    diffargmin = jnp.sum(jnp.where(sel, diff, 0.0)) / jnp.sum(sel)
    return jnp.mean(pdist), diffargmin


if __name__ == "__main__":
    B, K, D = 8, 512, 128          # forward hard-codes 512 embeds of dim 128
    key = jax.random.PRNGKey(0)
    k_pred, k_emb, k_idx, k_w = jax.random.split(key, 4)

    predict_latent = jax.random.normal(k_pred, (B, D), dtype=jnp.float32)
    embeds = jax.random.normal(k_emb, (K, D), dtype=jnp.float32)
    k_indices = jax.random.randint(k_idx, (B,), 0, K, dtype=jnp.int32)
    # The parameter is initialized to ones; use near-one values so transWeight's
    # standardization path is actually exercised (var != 0).
    weight = 1.0 + 0.1 * jax.random.normal(k_w, (D,), dtype=jnp.float32)

    mean_pdist, diffargmin = weight_regression_forward(
        predict_latent, k_indices, weight, embeds)
    jax.block_until_ready((mean_pdist, diffargmin))

    ref_mp, ref_da = _reference(predict_latent, k_indices, weight, embeds)

    # mean(pdist): smooth quantity; tolerance covers Gram-form vs subtract-square
    # f32 accumulation-order differences (~1e-6 relative).
    assert jnp.allclose(mean_pdist, ref_mp, rtol=1e-4, atol=1e-6), (mean_pdist, ref_mp)
    # diffargmin goes through a hard threshold (diff >= 0): entries within f32
    # rounding of 0 may be counted differently by the two formulations, shifting
    # the mean by ~1/count per flipped entry.  Tolerance covers a few such flips.
    assert jnp.allclose(diffargmin, ref_da, rtol=2e-3, atol=1e-5), (diffargmin, ref_da)

    print("KERNEL_OK")
</pallas_src>

<mosaic_0001>
module attributes {stable_mosaic.version = 11 : i64} {
  func.func @_wrm_kernel(%arg0: memref<8xi32, #tpu.memory_space<smem>>, %arg1: memref<1x128xf32, #tpu.memory_space<vmem>>, %arg2: memref<8x128xf32, #tpu.memory_space<vmem>>, %arg3: memref<512x128xf32, #tpu.memory_space<vmem>>, %arg4: memref<2xf32, #tpu.memory_space<smem>>) attributes {dimension_semantics = [], scalar_prefetch = 0 : i64, scratch_operands = 0 : i64, tpu.core_type = #tpu.core_type<tc>} {
    %c0 = arith.constant 0 : index
    %c0_0 = arith.constant 0 : index
    %0 = vector.load %arg1[%c0, %c0_0] : memref<1x128xf32, #tpu.memory_space<vmem>>, vector<1x128xf32>
    %c0_1 = arith.constant 0 : index
    %c0_2 = arith.constant 0 : index
    %1 = vector.load %arg2[%c0_1, %c0_2] : memref<8x128xf32, #tpu.memory_space<vmem>>, vector<8x128xf32>
    %c0_3 = arith.constant 0 : index
    %c0_4 = arith.constant 0 : index
    %2 = vector.load %arg3[%c0_3, %c0_4] : memref<512x128xf32, #tpu.memory_space<vmem>>, vector<512x128xf32>
    %3 = vector.shape_cast %0 : vector<1x128xf32> to vector<1x1x128xf32>
    %cst = arith.constant dense<0.000000e+00> : vector<1xf32>
    %4 = vector.multi_reduction <add>, %3, %cst [1, 2] : vector<1x1x128xf32> to vector<1xf32>
    %5 = vector.shape_cast %4 : vector<1xf32> to vector<1x1x1xf32>
    %6 = vector.extract %5[0, 0, 0] : f32 from vector<1x1x1xf32>
    %cst_5 = arith.constant 1.280000e+02 : f32
    %7 = arith.divf %6, %cst_5 : f32
    %8 = vector.broadcast %7 : f32 to vector<1x128xf32>
    %9 = arith.subf %0, %8 : vector<1x128xf32>
    %10 = arith.mulf %9, %9 : vector<1x128xf32>
    %11 = vector.shape_cast %10 : vector<1x128xf32> to vector<1x1x128xf32>
    %cst_6 = arith.constant dense<0.000000e+00> : vector<1xf32>
    %12 = vector.multi_reduction <add>, %11, %cst_6 [1, 2] : vector<1x1x128xf32> to vector<1xf32>
    %13 = vector.shape_cast %12 : vector<1xf32> to vector<1x1x1xf32>
    %14 = vector.extract %13[0, 0, 0] : f32 from vector<1x1x1xf32>
    %cst_7 = arith.constant 0.00787401571 : f32
    %15 = arith.mulf %14, %cst_7 : f32
    %16 = vector.broadcast %7 : f32 to vector<1x128xf32>
    %17 = arith.subf %0, %16 : vector<1x128xf32>
    %cst_8 = arith.constant 9.99999974E-6 : f32
    %18 = arith.addf %15, %cst_8 : f32
    %19 = math.rsqrt %18 : f32
    %20 = vector.broadcast %19 : f32 to vector<1x128xf32>
    %21 = arith.mulf %17, %20 : vector<1x128xf32>
    %cst_9 = arith.constant 7.000000e+00 : f32
    %22 = vector.broadcast %cst_9 : f32 to vector<1x128xf32>
    %23 = arith.mulf %22, %21 : vector<1x128xf32>
    %24 = arith.negf %23 : vector<1x128xf32>
    %25 = math.exp %24 : vector<1x128xf32>
    %cst_10 = arith.constant 1.000000e+00 : f32
    %26 = vector.broadcast %cst_10 : f32 to vector<1x128xf32>
    %27 = arith.addf %26, %25 : vector<1x128xf32>
    %28 = arith.divf %26, %27 : vector<1x128xf32>
    %29 = arith.mulf %28, %28 : vector<1x128xf32>
    %30 = vector.broadcast %29 : vector<1x128xf32> to vector<8x128xf32>
    %31 = arith.mulf %1, %30 : vector<8x128xf32>
    %cst_11 = arith.constant dense<0.000000e+00> : vector<8x512xf32>
    %32 = tpu.matmul %31, %2, %cst_11 {dimension_numbers = #tpu.dot_dimension_numbers<[1], [1], [0], [0], [0, 0, 1, 0], [], []>} : vector<8x128xf32>, vector<512x128xf32>, vector<8x512xf32> -> vector<8x512xf32>
    %33 = arith.mulf %1, %1 : vector<8x128xf32>
    %34 = tpu.concatenate %33, %29 in 0 : vector<8x128xf32>, vector<1x128xf32> -> vector<9x128xf32>
    %35 = arith.mulf %2, %2 : vector<512x128xf32>
    %36 = tpu.concatenate %35, %29 in 0 : vector<512x128xf32>, vector<1x128xf32> -> vector<513x128xf32>
    %cst_12 = arith.constant dense<0.000000e+00> : vector<9x513xf32>
    %37 = tpu.matmul %34, %36, %cst_12 {dimension_numbers = #tpu.dot_dimension_numbers<[1], [1], [0], [0], [0, 0, 1, 0], [], []>} : vector<9x128xf32>, vector<513x128xf32>, vector<9x513xf32> -> vector<9x513xf32>
    %38 = vector.extract_strided_slice %37 {offsets = [0, 512], sizes = [8, 1], strides = [1, 1]} : vector<9x513xf32> to vector<8x1xf32>
    %39 = vector.extract_strided_slice %37 {offsets = [8, 0], sizes = [1, 512], strides = [1, 1]} : vector<9x513xf32> to vector<1x512xf32>
    %40 = vector.broadcast %38 : vector<8x1xf32> to vector<8x512xf32>
    %41 = vector.broadcast %39 : vector<1x512xf32> to vector<8x512xf32>
    %42 = arith.addf %40, %41 : vector<8x512xf32>
    %cst_13 = arith.constant 2.000000e+00 : f32
    %43 = vector.broadcast %cst_13 : f32 to vector<8x512xf32>
    %44 = arith.mulf %43, %32 : vector<8x512xf32>
    %45 = arith.subf %42, %44 : vector<8x512xf32>
    %cst_14 = arith.constant 7.812500e-03 : f32
    %46 = vector.broadcast %cst_14 : f32 to vector<8x512xf32>
    %47 = arith.mulf %45, %46 : vector<8x512xf32>
    %cst_15 = arith.constant 0.000000e+00 : f32
    %48 = vector.broadcast %cst_15 : f32 to vector<8x512xf32>
    %49 = arith.maximumf %47, %48 : vector<8x512xf32>
    %50 = tpu.iota {dimensions = array<i32: 1>} : vector<1x512xi32>
    %c0_16 = arith.constant 0 : index
    %51 = memref.load %arg0[%c0_16] : memref<8xi32, #tpu.memory_space<smem>>
    %52 = vector.broadcast %51 : i32 to vector<1x512xi32>
    %53 = arith.cmpi eq, %50, %52 : vector<1x512xi32>
    %54 = arith.extui %53 : vector<1x512xi1> to vector<1x512xi32>
    %55 = arith.sitofp %54 : vector<1x512xi32> to vector<1x512xf32>
    %c1 = arith.constant 1 : index
    %56 = memref.load %arg0[%c1] : memref<8xi32, #tpu.memory_space<smem>>
    %57 = vector.broadcast %56 : i32 to vector<1x512xi32>
    %58 = arith.cmpi eq, %50, %57 : vector<1x512xi32>
    %59 = arith.extui %58 : vector<1x512xi1> to vector<1x512xi32>
    %60 = arith.sitofp %59 : vector<1x512xi32> to vector<1x512xf32>
    %c2 = arith.constant 2 : index
    %61 = memref.load %arg0[%c2] : memref<8xi32, #tpu.memory_space<smem>>
    %62 = vector.broadcast %61 : i32 to vector<1x512xi32>
    %63 = arith.cmpi eq, %50, %62 : vector<1x512xi32>
    %64 = arith.extui %63 : vector<1x512xi1> to vector<1x512xi32>
    %65 = arith.sitofp %64 : vector<1x512xi32> to vector<1x512xf32>
    %c3 = arith.constant 3 : index
    %66 = memref.load %arg0[%c3] : memref<8xi32, #tpu.memory_space<smem>>
    %67 = vector.broadcast %66 : i32 to vector<1x512xi32>
    %68 = arith.cmpi eq, %50, %67 : vector<1x512xi32>
    %69 = arith.extui %68 : vector<1x512xi1> to vector<1x512xi32>
    %70 = arith.sitofp %69 : vector<1x512xi32> to vector<1x512xf32>
    %c4 = arith.constant 4 : index
    %71 = memref.load %arg0[%c4] : memref<8xi32, #tpu.memory_space<smem>>
    %72 = vector.broadcast %71 : i32 to vector<1x512xi32>
    %73 = arith.cmpi eq, %50, %72 : vector<1x512xi32>
    %74 = arith.extui %73 : vector<1x512xi1> to vector<1x512xi32>
    %75 = arith.sitofp %74 : vector<1x512xi32> to vector<1x512xf32>
    %c5 = arith.constant 5 : index
    %76 = memref.load %arg0[%c5] : memref<8xi32, #tpu.memory_space<smem>>
    %77 = vector.broadcast %76 : i32 to vector<1x512xi32>
    %78 = arith.cmpi eq, %50, %77 : vector<1x512xi32>
    %79 = arith.extui %78 : vector<1x512xi1> to vector<1x512xi32>
    %80 = arith.sitofp %79 : vector<1x512xi32> to vector<1x512xf32>
    %c6 = arith.constant 6 : index
    %81 = memref.load %arg0[%c6] : memref<8xi32, #tpu.memory_space<smem>>
    %82 = vector.broadcast %81 : i32 to vector<1x512xi32>
    %83 = arith.cmpi eq, %50, %82 : vector<1x512xi32>
    %84 = arith.extui %83 : vector<1x512xi1> to vector<1x512xi32>
    %85 = arith.sitofp %84 : vector<1x512xi32> to vector<1x512xf32>
    %c7 = arith.constant 7 : index
    %86 = memref.load %arg0[%c7] : memref<8xi32, #tpu.memory_space<smem>>
    %87 = vector.broadcast %86 : i32 to vector<1x512xi32>
    %88 = arith.cmpi eq, %50, %87 : vector<1x512xi32>
    %89 = arith.extui %88 : vector<1x512xi1> to vector<1x512xi32>
    %90 = arith.sitofp %89 : vector<1x512xi32> to vector<1x512xf32>
    %91 = tpu.concatenate %55, %60, %65, %70, %75, %80, %85, %90 in 0 : vector<1x512xf32>, vector<1x512xf32>, vector<1x512xf32>, vector<1x512xf32>, vector<1x512xf32>, vector<1x512xf32>, vector<1x512xf32>, vector<1x512xf32> -> vector<8x512xf32>
    %92 = arith.mulf %49, %91 : vector<8x512xf32>
    %cst_17 = arith.constant dense<0.000000e+00> : vector<8xf32>
    %93 = vector.multi_reduction <add>, %92, %cst_17 [1] : vector<8x512xf32> to vector<8xf32>
    %94 = vector.shape_cast %93 : vector<8xf32> to vector<8x1xf32>
    %95 = vector.broadcast %94 : vector<8x1xf32> to vector<8x512xf32>
    %96 = arith.subf %95, %49 : vector<8x512xf32>
    %cst_18 = arith.constant 0.000000e+00 : f32
    %97 = vector.broadcast %cst_18 : f32 to vector<8x512xf32>
    %98 = arith.maximumf %96, %97 : vector<8x512xf32>
    %99 = vector.shape_cast %98 : vector<8x512xf32> to vector<1x8x512xf32>
    %cst_19 = arith.constant dense<0.000000e+00> : vector<1xf32>
    %100 = vector.multi_reduction <add>, %99, %cst_19 [1, 2] : vector<1x8x512xf32> to vector<1xf32>
    %101 = vector.shape_cast %100 : vector<1xf32> to vector<1x1x1xf32>
    %102 = vector.extract %101[0, 0, 0] : f32 from vector<1x1x1xf32>
    %cst_20 = arith.constant 0.000000e+00 : f32
    %103 = vector.broadcast %cst_20 : f32 to vector<8x512xf32>
    %104 = arith.cmpf oge, %96, %103 : vector<8x512xf32>
    %105 = arith.extui %104 : vector<8x512xi1> to vector<8x512xi32>
    %106 = arith.sitofp %105 : vector<8x512xi32> to vector<8x512xf32>
    %107 = vector.shape_cast %106 : vector<8x512xf32> to vector<1x8x512xf32>
    %cst_21 = arith.constant dense<0.000000e+00> : vector<1xf32>
    %108 = vector.multi_reduction <add>, %107, %cst_21 [1, 2] : vector<1x8x512xf32> to vector<1xf32>
    %109 = vector.shape_cast %108 : vector<1xf32> to vector<1x1x1xf32>
    %110 = vector.extract %109[0, 0, 0] : f32 from vector<1x1x1xf32>
    %111 = vector.shape_cast %94 : vector<8x1xf32> to vector<1x8x1xf32>
    %cst_22 = arith.constant dense<0.000000e+00> : vector<1xf32>
    %112 = vector.multi_reduction <add>, %111, %cst_22 [1, 2] : vector<1x8x1xf32> to vector<1xf32>
    %113 = vector.shape_cast %112 : vector<1xf32> to vector<1x1x1xf32>
    %114 = vector.extract %113[0, 0, 0] : f32 from vector<1x1x1xf32>
    %cst_23 = arith.constant 1.250000e-01 : f32
    %115 = arith.mulf %114, %cst_23 : f32
    %c0_24 = arith.constant 0 : index
    %116 = memref.load %arg4[%c0_24] : memref<2xf32, #tpu.memory_space<smem>>
    memref.store %115, %arg4[%c0_24] : memref<2xf32, #tpu.memory_space<smem>>
    %117 = arith.divf %102, %110 : f32
    %c1_25 = arith.constant 1 : index
    %118 = memref.load %arg4[%c1_25] : memref<2xf32, #tpu.memory_space<smem>>
    memref.store %117, %arg4[%c1_25] : memref<2xf32, #tpu.memory_space<smem>>
    return
  }
}

</mosaic_0001>

<llo_original>
// kernel: tpu_custom_call.1
$region0: #{tpu_custom_call.1}
  #allocation0 [shape = 'u32[]', space=smem, size = 0x4, offset = 0x4, fixed_abs, tag = 'smem constant byte address 0x4 - core index']
  #allocation1 [shape = 'u32[144,128]{1,0:T(1,128)}', space=vmem, size = 0x12000, scoped, tag = 'internal scratch']
  %s0 = inlined_call_operand.hbm [shape: s32[8], index: 0, kind: input, shape index: {}]
  %s1 = inlined_call_operand.vmem [shape: f32[1,128], index: 1, kind: input, shape index: {}]
  %s2 = inlined_call_operand.hbm [shape: f32[8,128], index: 2, kind: input, shape index: {}]
  %s3 = inlined_call_operand.hbm [shape: f32[512,128], index: 3, kind: input, shape index: {}]
  %s4 = inlined_call_operand.hbm [shape: f32[2], index: 4, kind: output, shape index: {}]
  %s5 = sld [smem:[#allocation0]]
  $region38: #{tpu_custom_call.1} parent=0
    _
  %s7 = ssub.s32 1, %s5
  %s8 = scalar_select 0, %s7, %s5
  $region1: #{tpu_custom_call.1} parent=0
    #allocation2 [shape = 'u8[512]{0}', space=smem, size = 0x200, scoped, tag = 'input window, operand 0, single buffered']
    #allocation3 [shape = 's32[1]{0}', space=sflag, size = 0x4, scoped, tag = 'scoped memory for tpu_custom_call.1']
    #allocation4 [shape = 's32[1]{0}', space=sflag, size = 0x4, scoped, tag = 'scoped memory for tpu_custom_call.1']
    #allocation5 [shape = 's32[1]{0}', space=sflag, size = 0x4, scoped, tag = 'scoped memory for tpu_custom_call.1']
    #allocation6 [shape = 'u8[4096]{0}', space=vmem, size = 0x1000, scoped, tag = 'input window, operand 2, single buffered']
    #allocation7 [shape = 'u8[262144]{0}', space=vmem, size = 0x40000, scoped, tag = 'input window, operand 3, single buffered']
    #allocation8 [shape = 's32[1]{0}', space=sflag, size = 0x4, scoped, tag = 'scoped memory for tpu_custom_call.1']
    #allocation9 [shape = 'u8[512]{0}', space=smem, size = 0x200, scoped, tag = 'output window, operand 0, single buffered']
    %9 = vsyncpa [#allocation4], 0
    %10 = vsyncpa [#allocation3], 0
    %11 = vsyncpa [#allocation8], 0
    %12 = vsyncpa [#allocation5], 0
    // Predicated region
    $region2: #{tpu_custom_call.1} parent=1 // pred_check
      _
    $region3: #{tpu_custom_call.1} parent=1 // pred_check_branch
      %14 = sbr.rel (0) target = $region5
    $region4: #{tpu_custom_call.1} parent=1 // pred_region
      %s16 = ssub.s32 16, 16
      %17 = vsyncadd [#allocation4], %s16
      %20 = dma.hbm_to_smem %s0, 16, [#allocation2], [#allocation4]
    $region5: #{tpu_custom_call.1} parent=1 // pred_fallthru
      _
    // Predicated region
    $region6: #{tpu_custom_call.1} parent=1 // pred_check
      _
    $region7: #{tpu_custom_call.1} parent=1 // pred_check_branch
      %22 = sbr.rel (0) target = $region9
    $region8: #{tpu_custom_call.1} parent=1 // pred_region
      _
    $region9: #{tpu_custom_call.1} parent=1 // pred_fallthru
      _
    // Predicated region
    $region10: #{tpu_custom_call.1} parent=1 // pred_check
      _
    $region11: #{tpu_custom_call.1} parent=1 // pred_check_branch
      %24 = sbr.rel (0) target = $region13
    $region12: #{tpu_custom_call.1} parent=1 // pred_region
      %s26 = ssub.s32 128, 128
      %27 = vsyncadd [#allocation3], %s26
      %s29 = sshll.u32 [#allocation6], 4
      %s30 = int_to_ptr.vmem [resolvable:$true] %s29
      %32 = dma.hbm_to_vmem [thread:$0]  %s2, 128, %s30, [#allocation3]
    $region13: #{tpu_custom_call.1} parent=1 // pred_fallthru
      _
    // Predicated region
    $region14: #{tpu_custom_call.1} parent=1 // pred_check
      _
    $region15: #{tpu_custom_call.1} parent=1 // pred_check_branch
      %34 = sbr.rel (0) target = $region17
    $region16: #{tpu_custom_call.1} parent=1 // pred_region
      %s36 = ssub.s32 8192, 8192
      %37 = vsyncadd [#allocation8], %s36
      %s38 = sshll.u32 [#allocation7], 4
      %s39 = int_to_ptr.vmem [resolvable:$true] %s38
      %44 = dma.hbm_to_vmem [thread:$0]  %s3, 8192, %s39, [#allocation8], 128, 128, 8
    $region17: #{tpu_custom_call.1} parent=1 // pred_fallthru
      _
    // Predicated region
    $region18: #{tpu_custom_call.1} parent=1 // pred_check
      _
    $region19: #{tpu_custom_call.1} parent=1 // pred_check_branch
      %46 = sbr.rel (0) target = $region21
    $region20: #{tpu_custom_call.1} parent=1 // pred_region
      %47 = dma.done [#allocation4], 16
    $region21: #{tpu_custom_call.1} parent=1 // pred_fallthru
      _
    // Predicated region
    $region22: #{tpu_custom_call.1} parent=1 // pred_check
      _
    $region23: #{tpu_custom_call.1} parent=1 // pred_check_branch
      %49 = sbr.rel (0) target = $region25
    $region24: #{tpu_custom_call.1} parent=1 // pred_region
      %50 = dma.done [#allocation3], 128
    $region25: #{tpu_custom_call.1} parent=1 // pred_fallthru
      _
    // Predicated region
    $region26: #{tpu_custom_call.1} parent=1 // pred_check
      _
    $region27: #{tpu_custom_call.1} parent=1 // pred_check_branch
      %52 = sbr.rel (0) target = $region29
    $region28: #{tpu_custom_call.1} parent=1 // pred_region
      %53 = dma.done [#allocation8], 8192
    $region29: #{tpu_custom_call.1} parent=1 // pred_fallthru
      _
    %54 = sfence
    %v55 = vld [vmem:[%s1] sm:$0x1]
    %v56 = vld [vmem:[#allocation6] sm:$0xff]
    %v57 = vld [vmem:[#allocation7] sm:$0xff]
    %v58 = vld [vmem:[#allocation7 + $0x8] sm:$0xff]
    %v59 = vld [vmem:[#allocation7 + $0x10] sm:$0xff]
    %v60 = vld [vmem:[#allocation7 + $0x18] sm:$0xff]
    %v61 = vld [vmem:[#allocation7 + $0x20] sm:$0xff]
    %v62 = vld [vmem:[#allocation7 + $0x28] sm:$0xff]
    %v63 = vld [vmem:[#allocation7 + $0x30] sm:$0xff]
    %v64 = vld [vmem:[#allocation7 + $0x38] sm:$0xff]
    %v65 = vld [vmem:[#allocation7 + $0x40] sm:$0xff]
    %v66 = vld [vmem:[#allocation7 + $0x48] sm:$0xff]
    %v67 = vld [vmem:[#allocation7 + $0x50] sm:$0xff]
    %v68 = vld [vmem:[#allocation7 + $0x58] sm:$0xff]
    %v69 = vld [vmem:[#allocation7 + $0x60] sm:$0xff]
    %v70 = vld [vmem:[#allocation7 + $0x68] sm:$0xff]
    %v71 = vld [vmem:[#allocation7 + $0x70] sm:$0xff]
    %v72 = vld [vmem:[#allocation7 + $0x78] sm:$0xff]
    %v73 = vld [vmem:[#allocation7 + $0x80] sm:$0xff]
    %v74 = vld [vmem:[#allocation7 + $0x88] sm:$0xff]
    %v75 = vld [vmem:[#allocation7 + $0x90] sm:$0xff]
    %v76 = vld [vmem:[#allocation7 + $0x98] sm:$0xff]
    %v77 = vld [vmem:[#allocation7 + $0xa0] sm:$0xff]
    %v78 = vld [vmem:[#allocation7 + $0xa8] sm:$0xff]
    %v79 = vld [vmem:[#allocation7 + $0xb0] sm:$0xff]
    %v80 = vld [vmem:[#allocation7 + $0xb8] sm:$0xff]
    %v81 = vld [vmem:[#allocation7 + $0xc0] sm:$0xff]
    %v82 = vld [vmem:[#allocation7 + $0xc8] sm:$0xff]
    %v83 = vld [vmem:[#allocation7 + $0xd0] sm:$0xff]
    %v84 = vld [vmem:[#allocation7 + $0xd8] sm:$0xff]
    %v85 = vld [vmem:[#allocation7 + $0xe0] sm:$0xff]
    %v86 = vld [vmem:[#allocation7 + $0xe8] sm:$0xff]
    %v87 = vld [vmem:[#allocation7 + $0xf0] sm:$0xff]
    %v88 = vld [vmem:[#allocation7 + $0xf8] sm:$0xff]
    %v89 = vld [vmem:[#allocation7 + $0x100] sm:$0xff]
    %v90 = vld [vmem:[#allocation7 + $0x108] sm:$0xff]
    %v91 = vld [vmem:[#allocation7 + $0x110] sm:$0xff]
    %v92 = vld [vmem:[#allocation7 + $0x118] sm:$0xff]
    %v93 = vld [vmem:[#allocation7 + $0x120] sm:$0xff]
    %v94 = vld [vmem:[#allocation7 + $0x128] sm:$0xff]
    %v95 = vld [vmem:[#allocation7 + $0x130] sm:$0xff]
    %v96 = vld [vmem:[#allocation7 + $0x138] sm:$0xff]
    %v97 = vld [vmem:[#allocation7 + $0x140] sm:$0xff]
    %v98 = vld [vmem:[#allocation7 + $0x148] sm:$0xff]
    %v99 = vld [vmem:[#allocation7 + $0x150] sm:$0xff]
    %v100 = vld [vmem:[#allocation7 + $0x158] sm:$0xff]
    %v101 = vld [vmem:[#allocation7 + $0x160] sm:$0xff]
    %v102 = vld [vmem:[#allocation7 + $0x168] sm:$0xff]
    %v103 = vld [vmem:[#allocation7 + $0x170] sm:$0xff]
    %v104 = vld [vmem:[#allocation7 + $0x178] sm:$0xff]
    %v105 = vld [vmem:[#allocation7 + $0x180] sm:$0xff]
    %v106 = vld [vmem:[#allocation7 + $0x188] sm:$0xff]
    %v107 = vld [vmem:[#allocation7 + $0x190] sm:$0xff]
    %v108 = vld [vmem:[#allocation7 + $0x198] sm:$0xff]
    %v109 = vld [vmem:[#allocation7 + $0x1a0] sm:$0xff]
    %v110 = vld [vmem:[#allocation7 + $0x1a8] sm:$0xff]
    %v111 = vld [vmem:[#allocation7 + $0x1b0] sm:$0xff]
    %v112 = vld [vmem:[#allocation7 + $0x1b8] sm:$0xff]
    %v113 = vld [vmem:[#allocation7 + $0x1c0] sm:$0xff]
    %v114 = vld [vmem:[#allocation7 + $0x1c8] sm:$0xff]
    %v115 = vld [vmem:[#allocation7 + $0x1d0] sm:$0xff]
    %v116 = vld [vmem:[#allocation7 + $0x1d8] sm:$0xff]
    %v117 = vld [vmem:[#allocation7 + $0x1e0] sm:$0xff]
    %v118 = vld [vmem:[#allocation7 + $0x1e8] sm:$0xff]
    %v119 = vld [vmem:[#allocation7 + $0x1f0] sm:$0xff]
    %v120 = vld [vmem:[#allocation7 + $0x1f8] sm:$0xff]
    %vm121 = vcmask 1040384
    %v122 = vsel %vm121, %v55, 0.0
    %123 = vadd.xlane.f32.xlu0 %v122
    %v124 = vpop.xlane.xlu0 %123
    %v125 = vrot.slane %v124, 4
    %v126 = vadd.f32 %v124, %v125
    %v127 = vrot.slane %v126, 2
    %v128 = vadd.f32 %v126, %v127
    %v129 = vrot.slane %v128, 1
    %v130 = vadd.f32 %v128, %v129
    %s131 = vtos %v130
    %v132 = vrcp.pop 128.0
    %s133 = vtos %v132
    %s134 = smul.f32 %s131, %s133
    %v135 = vstv %s134
    %v136 = vsub.f32 %v55, %v135
    %v137 = vmul.f32 %v136, %v136
    %v138 = vsel %vm121, %v137, 0.0
    %139 = vadd.xlane.f32.xlu0 %v138
    %v140 = vpop.xlane.xlu0 %139
    %v141 = vrot.slane %v140, 4
    %v142 = vadd.f32 %v140, %v141
    %v143 = vrot.slane %v142, 2
    %v144 = vadd.f32 %v142, %v143
    %v145 = vrot.slane %v144, 1
    %v146 = vadd.f32 %v144, %v145
    %s147 = vtos %v146
    %s148 = smul.f32 %s147, 0.007874016
    %s149 = sadd.f32 %s148, 1e-05
    %v150 = vstv %s149
    %v151 = vrsqrt.pop %v150
    %s152 = vtos %v151
    %v153 = vstv %s152
    %v154 = vmul.f32 %v136, %v153
    %v155 = vmul.f32 %v154, 7.0
    %v156 = vxor.u32 %v155, 2147483648
    %v157 = vmul.f32 %v156, 1.442695
    %v158 = vpow.pop %v157
    %v159 = vadd.f32 %v158, 1.0
    %v160 = vrcp.pop %v159
    %v161 = vmul.f32 1.0, %v160
    %v162 = vmul.f32 %v161, %v161
    %v164 = vlaneseq
    %v165 = vshrl.u32 %v164, 7
    %v166 = vsub.s32 0, %v165
    %v167 = vrot.slane %v162, %v166
    %v169 = vmul.f32 %v56, %v167
    %170 = vmatprep.subr.mxu0 0.0
    %171 = vmatpush1.xpose.msra.mxu0 %v57
    %172 = vmatprep.subr.mxu0 0.0
    %173 = vmatpush1.xpose.msra.mxu0 %v58
    %174 = vmatprep.subr.mxu0 0.0
    %175 = vmatpush1.xpose.msra.mxu0 %v59
    %176 = vmatprep.subr.mxu0 0.0
    %177 = vmatpush1.xpose.msra.mxu0 %v60
    %178 = vmatprep.subr.mxu0 0.0
    %179 = vmatpush1.xpose.msra.mxu0 %v61
    %180 = vmatprep.subr.mxu0 0.0
    %181 = vmatpush1.xpose.msra.mxu0 %v62
    %182 = vmatprep.subr.mxu0 0.0
    %183 = vmatpush1.xpose.msra.mxu0 %v63
    %184 = vmatprep.subr.mxu0 0.0
    %185 = vmatpush1.xpose.msra.mxu0 %v64
    %186 = vmatprep.subr.mxu0 0.0
    %187 = vmatpush1.xpose.msra.mxu0 %v65
    %188 = vmatprep.subr.mxu0 0.0
    %189 = vmatpush1.xpose.msra.mxu0 %v66
    %190 = vmatprep.subr.mxu0 0.0
    %191 = vmatpush1.xpose.msra.mxu0 %v67
    %192 = vmatprep.subr.mxu0 0.0
    %193 = vmatpush1.xpose.msra.mxu0 %v68
    %194 = vmatprep.subr.mxu0 0.0
    %195 = vmatpush1.xpose.msra.mxu0 %v69
    %196 = vmatprep.subr.mxu0 0.0
    %197 = vmatpush1.xpose.msra.mxu0 %v70
    %198 = vmatprep.subr.mxu0 0.0
    %199 = vmatpush1.xpose.msra.mxu0 %v71
    %200 = vmatprep.subr.mxu0 0.0
    %201 = vmatpush1.xpose.msra.mxu0 %v72
    %202 = vmatprep.subr.mxu0 0.0
    %203 = vmatpush1.xpose.msra.mxu0 %v73
    %204 = vmatprep.subr.mxu0 0.0
    %205 = vmatpush1.xpose.msra.mxu0 %v74
    %206 = vmatprep.subr.mxu0 0.0
    %207 = vmatpush1.xpose.msra.mxu0 %v75
    %208 = vmatprep.subr.mxu0 0.0
    %209 = vmatpush1.xpose.msra.mxu0 %v76
    %210 = vmatprep.subr.mxu0 0.0
    %211 = vmatpush1.xpose.msra.mxu0 %v77
    %212 = vmatprep.subr.mxu0 0.0
    %213 = vmatpush1.xpose.msra.mxu0 %v78
    %214 = vmatprep.subr.mxu0 0.0
    %215 = vmatpush1.xpose.msra.mxu0 %v79
    %216 = vmatprep.subr.mxu0 0.0
    %217 = vmatpush1.xpose.msra.mxu0 %v80
    %218 = vmatprep.subr.mxu0 0.0
    %219 = vmatpush1.xpose.msra.mxu0 %v81
    %220 = vmatprep.subr.mxu0 0.0
    %221 = vmatpush1.xpose.msra.mxu0 %v82
    %222 = vmatprep.subr.mxu0 0.0
    %223 = vmatpush1.xpose.msra.mxu0 %v83
    %224 = vmatprep.subr.mxu0 0.0
    %225 = vmatpush1.xpose.msra.mxu0 %v84
    %226 = vmatprep.subr.mxu0 0.0
    %227 = vmatpush1.xpose.msra.mxu0 %v85
    %228 = vmatprep.subr.mxu0 0.0
    %229 = vmatpush1.xpose.msra.mxu0 %v86
    %230 = vmatprep.subr.mxu0 0.0
    %231 = vmatpush1.xpose.msra.mxu0 %v87
    %232 = vmatprep.subr.mxu0 0.0
    %233 = vmatpush1.xpose.msra.mxu0 %v88
    %234 = vmatprep.mubr.f32.mxu0 0.0
    %235 = vmatmul.mubr.f32.gmra.mrb[0].mxu0 %v169
    %v236 = vpop.f32.mrb[0].mxu0
    %v237 = vadd.f32 0.0, %v236
    %v238 = vpop.f32.mrb[0].mxu0
    %v239 = vadd.f32 0.0, %v238
    %240 = vdwg.mxu0
    %241 = vmatprep.subr.mxu0 0.0
    %242 = vmatpush1.xpose.msra.mxu0 %v89
    %243 = vmatprep.subr.mxu0 0.0
    %244 = vmatpush1.xpose.msra.mxu0 %v90
    %245 = vmatprep.subr.mxu0 0.0
    %246 = vmatpush1.xpose.msra.mxu0 %v91
    %247 = vmatprep.subr.mxu0 0.0
    %248 = vmatpush1.xpose.msra.mxu0 %v92
    %249 = vmatprep.subr.mxu0 0.0
    %250 = vmatpush1.xpose.msra.mxu0 %v93
    %251 = vmatprep.subr.mxu0 0.0
    %252 = vmatpush1.xpose.msra.mxu0 %v94
    %253 = vmatprep.subr.mxu0 0.0
    %254 = vmatpush1.xpose.msra.mxu0 %v95
    %255 = vmatprep.subr.mxu0 0.0
    %256 = vmatpush1.xpose.msra.mxu0 %v96
    %257 = vmatprep.subr.mxu0 0.0
    %258 = vmatpush1.xpose.msra.mxu0 %v97
    %259 = vmatprep.subr.mxu0 0.0
    %260 = vmatpush1.xpose.msra.mxu0 %v98
    %261 = vmatprep.subr.mxu0 0.0
    %262 = vmatpush1.xpose.msra.mxu0 %v99
    %263 = vmatprep.subr.mxu0 0.0
    %264 = vmatpush1.xpose.msra.mxu0 %v100
    %265 = vmatprep.subr.mxu0 0.0
    %266 = vmatpush1.xpose.msra.mxu0 %v101
    %267 = vmatprep.subr.mxu0 0.0
    %268 = vmatpush1.xpose.msra.mxu0 %v102
    %269 = vmatprep.subr.mxu0 0.0
    %270 = vmatpush1.xpose.msra.mxu0 %v103
    %271 = vmatprep.subr.mxu0 0.0
    %272 = vmatpush1.xpose.msra.mxu0 %v104
    %273 = vmatprep.subr.mxu0 0.0
    %274 = vmatpush1.xpose.msra.mxu0 %v105
    %275 = vmatprep.subr.mxu0 0.0
    %276 = vmatpush1.xpose.msra.mxu0 %v106
    %277 = vmatprep.subr.mxu0 0.0
    %278 = vmatpush1.xpose.msra.mxu0 %v107
    %279 = vmatprep.subr.mxu0 0.0
    %280 = vmatpush1.xpose.msra.mxu0 %v108
    %281 = vmatprep.subr.mxu0 0.0
    %282 = vmatpush1.xpose.msra.mxu0 %v109
    %283 = vmatprep.subr.mxu0 0.0
    %284 = vmatpush1.xpose.msra.mxu0 %v110
    %285 = vmatprep.subr.mxu0 0.0
    %286 = vmatpush1.xpose.msra.mxu0 %v111
    %287 = vmatprep.subr.mxu0 0.0
    %288 = vmatpush1.xpose.msra.mxu0 %v112
    %289 = vmatprep.subr.mxu0 0.0
    %290 = vmatpush1.xpose.msra.mxu0 %v113
    %291 = vmatprep.subr.mxu0 0.0
    %292 = vmatpush1.xpose.msra.mxu0 %v114
    %293 = vmatprep.subr.mxu0 0.0
    %294 = vmatpush1.xpose.msra.mxu0 %v115
    %295 = vmatprep.subr.mxu0 0.0
    %296 = vmatpush1.xpose.msra.mxu0 %v116
    %297 = vmatprep.subr.mxu0 0.0
    %298 = vmatpush1.xpose.msra.mxu0 %v117
    %299 = vmatprep.subr.mxu0 0.0
    %300 = vmatpush1.xpose.msra.mxu0 %v118
    %301 = vmatprep.subr.mxu0 0.0
    %302 = vmatpush1.xpose.msra.mxu0 %v119
    %303 = vmatprep.subr.mxu0 0.0
    %304 = vmatpush1.xpose.msra.mxu0 %v120
    %305 = vmatprep.mubr.f32.mxu0 0.0
    %306 = vmatmul.mubr.f32.gmra.mrb[0].mxu0 %v169
    %v307 = vpop.f32.mrb[0].mxu0
    %v308 = vadd.f32 0.0, %v307
    %v309 = vpop.f32.mrb[0].mxu0
    %v310 = vadd.f32 0.0, %v309
    %311 = vdwg.mxu0
    %v312 = vmul.f32 %v56, %v56
    %v313 = vmul.f32 %v57, %v57
    %v314 = vmul.f32 %v58, %v58
    %v315 = vmul.f32 %v59, %v59
    %v316 = vmul.f32 %v60, %v60
    %v317 = vmul.f32 %v61, %v61
    %v318 = vmul.f32 %v62, %v62
    %v319 = vmul.f32 %v63, %v63
    %v320 = vmul.f32 %v64, %v64
    %v321 = vmul.f32 %v65, %v65
    %v322 = vmul.f32 %v66, %v66
    %v323 = vmul.f32 %v67, %v67
    %v324 = vmul.f32 %v68, %v68
    %v325 = vmul.f32 %v69, %v69
    %v326 = vmul.f32 %v70, %v70
    %v327 = vmul.f32 %v71, %v71
    %v328 = vmul.f32 %v72, %v72
    %v329 = vmul.f32 %v73, %v73
    %v330 = vmul.f32 %v74, %v74
    %v331 = vmul.f32 %v75, %v75
    %v332 = vmul.f32 %v76, %v76
    %v333 = vmul.f32 %v77, %v77
    %v334 = vmul.f32 %v78, %v78
    %v335 = vmul.f32 %v79, %v79
    %v336 = vmul.f32 %v80, %v80
    %v337 = vmul.f32 %v81, %v81
    %v338 = vmul.f32 %v82, %v82
    %v339 = vmul.f32 %v83, %v83
    %v340 = vmul.f32 %v84, %v84
    %v341 = vmul.f32 %v85, %v85
    %v342 = vmul.f32 %v86, %v86
    %v343 = vmul.f32 %v87, %v87
    %v344 = vmul.f32 %v88, %v88
    %v345 = vmul.f32 %v89, %v89
    %v346 = vmul.f32 %v90, %v90
    %v347 = vmul.f32 %v91, %v91
    %v348 = vmul.f32 %v92, %v92
    %v349 = vmul.f32 %v93, %v93
    %v350 = vmul.f32 %v94, %v94
    %v351 = vmul.f32 %v95, %v95
    %v352 = vmul.f32 %v96, %v96
    %v353 = vmul.f32 %v97, %v97
    %v354 = vmul.f32 %v98, %v98
    %v355 = vmul.f32 %v99, %v99
    %v356 = vmul.f32 %v100, %v100
    %v357 = vmul.f32 %v101, %v101
    %v358 = vmul.f32 %v102, %v102
    %v359 = vmul.f32 %v103, %v103
    %v360 = vmul.f32 %v104, %v104
    %v361 = vmul.f32 %v105, %v105
    %v362 = vmul.f32 %v106, %v106
    %v363 = vmul.f32 %v107, %v107
    %v364 = vmul.f32 %v108, %v108
    %v365 = vmul.f32 %v109, %v109
    %v366 = vmul.f32 %v110, %v110
    %v367 = vmul.f32 %v111, %v111
    %v368 = vmul.f32 %v112, %v112
    %v369 = vmul.f32 %v113, %v113
    %v370 = vmul.f32 %v114, %v114
    %v371 = vmul.f32 %v115, %v115
    %v372 = vmul.f32 %v116, %v116
    %v373 = vmul.f32 %v117, %v117
    %v374 = vmul.f32 %v118, %v118
    %v375 = vmul.f32 %v119, %v119
    %v376 = vmul.f32 %v120, %v120
    %377 = vmatprep.subr.mxu0 0.0
    %378 = vmatpush1.xpose.msra.mxu0 %v313
    %379 = vmatprep.subr.mxu0 0.0
    %380 = vmatpush1.xpose.msra.mxu0 %v314
    %381 = vmatprep.subr.mxu0 0.0
    %382 = vmatpush1.xpose.msra.mxu0 %v315
    %383 = vmatprep.subr.mxu0 0.0
    %384 = vmatpush1.xpose.msra.mxu0 %v316
    %385 = vmatprep.subr.mxu0 0.0
    %386 = vmatpush1.xpose.msra.mxu0 %v317
    %387 = vmatprep.subr.mxu0 0.0
    %388 = vmatpush1.xpose.msra.mxu0 %v318
    %389 = vmatprep.subr.mxu0 0.0
    %390 = vmatpush1.xpose.msra.mxu0 %v319
    %391 = vmatprep.subr.mxu0 0.0
    %392 = vmatpush1.xpose.msra.mxu0 %v320
    %393 = vmatprep.subr.mxu0 0.0
    %394 = vmatpush1.xpose.msra.mxu0 %v321
    %395 = vmatprep.subr.mxu0 0.0
    %396 = vmatpush1.xpose.msra.mxu0 %v322
    %397 = vmatprep.subr.mxu0 0.0
    %398 = vmatpush1.xpose.msra.mxu0 %v323
    %399 = vmatprep.subr.mxu0 0.0
    %400 = vmatpush1.xpose.msra.mxu0 %v324
    %401 = vmatprep.subr.mxu0 0.0
    %402 = vmatpush1.xpose.msra.mxu0 %v325
    %403 = vmatprep.subr.mxu0 0.0
    %404 = vmatpush1.xpose.msra.mxu0 %v326
    %405 = vmatprep.subr.mxu0 0.0
    %406 = vmatpush1.xpose.msra.mxu0 %v327
    %407 = vmatprep.subr.mxu0 0.0
    %408 = vmatpush1.xpose.msra.mxu0 %v328
    %409 = vmatprep.subr.mxu0 0.0
    %410 = vmatpush1.xpose.msra.mxu0 %v329
    %411 = vmatprep.subr.mxu0 0.0
    %412 = vmatpush1.xpose.msra.mxu0 %v330
    %413 = vmatprep.subr.mxu0 0.0
    %414 = vmatpush1.xpose.msra.mxu0 %v331
    %415 = vmatprep.subr.mxu0 0.0
    %416 = vmatpush1.xpose.msra.mxu0 %v332
    %417 = vmatprep.subr.mxu0 0.0
    %418 = vmatpush1.xpose.msra.mxu0 %v333
    %419 = vmatprep.subr.mxu0 0.0
    %420 = vmatpush1.xpose.msra.mxu0 %v334
    %421 = vmatprep.subr.mxu0 0.0
    %422 = vmatpush1.xpose.msra.mxu0 %v335
    %423 = vmatprep.subr.mxu0 0.0
    %424 = vmatpush1.xpose.msra.mxu0 %v336
    %425 = vmatprep.subr.mxu0 0.0
    %426 = vmatpush1.xpose.msra.mxu0 %v337
    %427 = vmatprep.subr.mxu0 0.0
    %428 = vmatpush1.xpose.msra.mxu0 %v338
    %429 = vmatprep.subr.mxu0 0.0
    %430 = vmatpush1.xpose.msra.mxu0 %v339
    %431 = vmatprep.subr.mxu0 0.0
    %432 = vmatpush1.xpose.msra.mxu0 %v340
    %433 = vmatprep.subr.mxu0 0.0
    %434 = vmatpush1.xpose.msra.mxu0 %v341
    %435 = vmatprep.subr.mxu0 0.0
    %436 = vmatpush1.xpose.msra.mxu0 %v342
    %437 = vmatprep.subr.mxu0 0.0
    %438 = vmatpush1.xpose.msra.mxu0 %v343
    %439 = vmatprep.subr.mxu0 0.0
    %440 = vmatpush1.xpose.msra.mxu0 %v344
    %441 = vmatprep.mubr.f32.mxu0 0.0
    %442 = vmatmul.mubr.f32.gmra.mrb[0].mxu0 %v312
    %v443 = vpop.f32.mrb[0].mxu0
    %v444 = vpop.f32.mrb[0].mxu0
    %445 = vmatprep.mubr.f32.mxu0 0.0
    %446 = vmatmul.mubr.f32.gmra.mrb[0].mxu0 %v162
    %v447 = vpop.f32.mrb[0].mxu0
    %v448 = vadd.f32 0.0, %v447
    %v449 = vpop.f32.mrb[0].mxu0
    %v450 = vadd.f32 0.0, %v449
    %451 = vdwg.mxu0
    %452 = vmatprep.subr.mxu0 0.0
    %453 = vmatpush1.xpose.msra.mxu0 %v345
    %454 = vmatprep.subr.mxu0 0.0
    %455 = vmatpush1.xpose.msra.mxu0 %v346
    %456 = vmatprep.subr.mxu0 0.0
    %457 = vmatpush1.xpose.msra.mxu0 %v347
    %458 = vmatprep.subr.mxu0 0.0
    %459 = vmatpush1.xpose.msra.mxu0 %v348
    %460 = vmatprep.subr.mxu0 0.0
    %461 = vmatpush1.xpose.msra.mxu0 %v349
    %462 = vmatprep.subr.mxu0 0.0
    %463 = vmatpush1.xpose.msra.mxu0 %v350
    %464 = vmatprep.subr.mxu0 0.0
    %465 = vmatpush1.xpose.msra.mxu0 %v351
    %466 = vmatprep.subr.mxu0 0.0
    %467 = vmatpush1.xpose.msra.mxu0 %v352
    %468 = vmatprep.subr.mxu0 0.0
    %469 = vmatpush1.xpose.msra.mxu0 %v353
    %470 = vmatprep.subr.mxu0 0.0
    %471 = vmatpush1.xpose.msra.mxu0 %v354
    %472 = vmatprep.subr.mxu0 0.0
    %473 = vmatpush1.xpose.msra.mxu0 %v355
    %474 = vmatprep.subr.mxu0 0.0
    %475 = vmatpush1.xpose.msra.mxu0 %v356
    %476 = vmatprep.subr.mxu0 0.0
    %477 = vmatpush1.xpose.msra.mxu0 %v357
    %478 = vmatprep.subr.mxu0 0.0
    %479 = vmatpush1.xpose.msra.mxu0 %v358
    %480 = vmatprep.subr.mxu0 0.0
    %481 = vmatpush1.xpose.msra.mxu0 %v359
    %482 = vmatprep.subr.mxu0 0.0
    %483 = vmatpush1.xpose.msra.mxu0 %v360
    %484 = vmatprep.subr.mxu0 0.0
    %485 = vmatpush1.xpose.msra.mxu0 %v361
    %486 = vmatprep.subr.mxu0 0.0
    %487 = vmatpush1.xpose.msra.mxu0 %v362
    %488 = vmatprep.subr.mxu0 0.0
    %489 = vmatpush1.xpose.msra.mxu0 %v363
    %490 = vmatprep.subr.mxu0 0.0
    %491 = vmatpush1.xpose.msra.mxu0 %v364
    %492 = vmatprep.subr.mxu0 0.0
    %493 = vmatpush1.xpose.msra.mxu0 %v365
    %494 = vmatprep.subr.mxu0 0.0
    %495 = vmatpush1.xpose.msra.mxu0 %v366
    %496 = vmatprep.subr.mxu0 0.0
    %497 = vmatpush1.xpose.msra.mxu0 %v367
    %498 = vmatprep.subr.mxu0 0.0
    %499 = vmatpush1.xpose.msra.mxu0 %v368
    %500 = vmatprep.subr.mxu0 0.0
    %501 = vmatpush1.xpose.msra.mxu0 %v369
    %502 = vmatprep.subr.mxu0 0.0
    %503 = vmatpush1.xpose.msra.mxu0 %v370
    %504 = vmatprep.subr.mxu0 0.0
    %505 = vmatpush1.xpose.msra.mxu0 %v371
    %506 = vmatprep.subr.mxu0 0.0
    %507 = vmatpush1.xpose.msra.mxu0 %v372
    %508 = vmatprep.subr.mxu0 0.0
    %509 = vmatpush1.xpose.msra.mxu0 %v373
    %510 = vmatprep.subr.mxu0 0.0
    %511 = vmatpush1.xpose.msra.mxu0 %v374
    %512 = vmatprep.subr.mxu0 0.0
    %513 = vmatpush1.xpose.msra.mxu0 %v375
    %514 = vmatprep.subr.mxu0 0.0
    %515 = vmatpush1.xpose.msra.mxu0 %v376
    %516 = vmatprep.mubr.f32.mxu0 0.0
    %517 = vmatmul.mubr.f32.gmra.mrb[0].mxu0 %v312
    %v518 = vpop.f32.mrb[0].mxu0
    %v519 = vpop.f32.mrb[0].mxu0
    %520 = vmatprep.mubr.f32.mxu0 0.0
    %521 = vmatmul.mubr.f32.gmra.mrb[0].mxu0 %v162
    %v522 = vpop.f32.mrb[0].mxu0
    %v523 = vadd.f32 0.0, %v522
    %v524 = vpop.f32.mrb[0].mxu0
    %v525 = vadd.f32 0.0, %v524
    %526 = vdwg.mxu0
    %527 = vmatprep.subr.mxu0 0.0
    %528 = vmatpush1.xpose.msra.mxu0 %v162
    %529 = vmatprep.subr.mxu0 0.0
    %530 = vmatpush1.xpose.msra.mxu0 0.0
    %531 = vmatprep.subr.mxu0 0.0
    %532 = vmatpush1.xpose.msra.mxu0 0.0
    %533 = vmatprep.subr.mxu0 0.0
    %534 = vmatpush1.xpose.msra.mxu0 0.0
    %535 = vmatprep.subr.mxu0 0.0
    %536 = vmatpush1.xpose.msra.mxu0 0.0
    %537 = vmatprep.subr.mxu0 0.0
    %538 = vmatpush1.xpose.msra.mxu0 0.0
    %539 = vmatprep.subr.mxu0 0.0
    %540 = vmatpush1.xpose.msra.mxu0 0.0
    %541 = vmatprep.subr.mxu0 0.0
    %542 = vmatpush1.xpose.msra.mxu0 0.0
    %543 = vmatprep.subr.mxu0 0.0
    %544 = vmatpush1.xpose.msra.mxu0 0.0
    %545 = vmatprep.subr.mxu0 0.0
    %546 = vmatpush1.xpose.msra.mxu0 0.0
    %547 = vmatprep.subr.mxu0 0.0
    %548 = vmatpush1.xpose.msra.mxu0 0.0
    %549 = vmatprep.subr.mxu0 0.0
    %550 = vmatpush1.xpose.msra.mxu0 0.0
    %551 = vmatprep.subr.mxu0 0.0
    %552 = vmatpush1.xpose.msra.mxu0 0.0
    %553 = vmatprep.subr.mxu0 0.0
    %554 = vmatpush1.xpose.msra.mxu0 0.0
    %555 = vmatprep.subr.mxu0 0.0
    %556 = vmatpush1.xpose.msra.mxu0 0.0
    %557 = vmatprep.subr.mxu0 0.0
    %558 = vmatpush1.xpose.msra.mxu0 0.0
    %559 = vmatprep.subr.mxu0 0.0
    %560 = vmatpush1.xpose.msra.mxu0 0.0
    %561 = vmatprep.subr.mxu0 0.0
    %562 = vmatpush1.xpose.msra.mxu0 0.0
    %563 = vmatprep.subr.mxu0 0.0
    %564 = vmatpush1.xpose.msra.mxu0 0.0
    %565 = vmatprep.subr.mxu0 0.0
    %566 = vmatpush1.xpose.msra.mxu0 0.0
    %567 = vmatprep.subr.mxu0 0.0
    %568 = vmatpush1.xpose.msra.mxu0 0.0
    %569 = vmatprep.subr.mxu0 0.0
    %570 = vmatpush1.xpose.msra.mxu0 0.0
    %571 = vmatprep.subr.mxu0 0.0
    %572 = vmatpush1.xpose.msra.mxu0 0.0
    %573 = vmatprep.subr.mxu0 0.0
    %574 = vmatpush1.xpose.msra.mxu0 0.0
    %575 = vmatprep.subr.mxu0 0.0
    %576 = vmatpush1.xpose.msra.mxu0 0.0
    %577 = vmatprep.subr.mxu0 0.0
    %578 = vmatpush1.xpose.msra.mxu0 0.0
    %579 = vmatprep.subr.mxu0 0.0
    %580 = vmatpush1.xpose.msra.mxu0 0.0
    %581 = vmatprep.subr.mxu0 0.0
    %582 = vmatpush1.xpose.msra.mxu0 0.0
    %583 = vmatprep.subr.mxu0 0.0
    %584 = vmatpush1.xpose.msra.mxu0 0.0
    %585 = vmatprep.subr.mxu0 0.0
    %586 = vmatpush1.xpose.msra.mxu0 0.0
    %587 = vmatprep.subr.mxu0 0.0
    %588 = vmatpush1.xpose.msra.mxu0 0.0
    %589 = vmatprep.subr.mxu0 0.0
    %590 = vmatpush1.xpose.msra.mxu0 0.0
    %591 = vmatprep.mubr.f32.mxu0 0.0
    %592 = vmatmul.mubr.f32.gmra.mrb[0].mxu0 %v312
    %v593 = vpop.f32.mrb[0].mxu0
    %v594 = vadd.f32 0.0, %v593
    %v595 = vpop.f32.mrb[0].mxu0
    %596 = vmatprep.mubr.f32.mxu0 0.0
    %597 = vmatmul.mubr.f32.gmra.mrb[0].mxu0 %v162
    %v598 = vpop.f32.mrb[0].mxu0
    %v599 = vpop.f32.mrb[0].mxu0
    %600 = vdwg.mxu0
    %602 = vset.pattern.permute.xlu0 0
    %603 = vperm.xlu0 %602, %v594
    %v604 = vpop.permute.xlu0 %603
    %v606 = vlaneseq
    %v607 = vshrl.u32 %v606, 7
    %v608 = vsub.s32 0, %v607
    %v609 = vrot.slane %v448, %v608
    %v610 = vlaneseq
    %v611 = vshrl.u32 %v610, 7
    %v612 = vsub.s32 0, %v611
    %v613 = vrot.slane %v450, %v612
    %v614 = vlaneseq
    %v615 = vshrl.u32 %v614, 7
    %v616 = vsub.s32 0, %v615
    %v617 = vrot.slane %v523, %v616
    %v618 = vlaneseq
    %v619 = vshrl.u32 %v618, 7
    %v620 = vsub.s32 0, %v619
    %v621 = vrot.slane %v525, %v620
    %v622 = vadd.f32 %v604, %v609
    %v623 = vadd.f32 %v604, %v613
    %v624 = vadd.f32 %v604, %v617
    %v625 = vadd.f32 %v604, %v621
    %v626 = vmul.f32 %v237, 2.0
    %v627 = vmul.f32 %v239, 2.0
    %v628 = vmul.f32 %v308, 2.0
    %v629 = vmul.f32 %v310, 2.0
    %v630 = vsub.f32 %v622, %v626
    %v631 = vsub.f32 %v623, %v627
    %v632 = vsub.f32 %v624, %v628
    %v633 = vsub.f32 %v625, %v629
    %v634 = vmul.f32 %v630, 0.0078125
    %v635 = vmul.f32 %v631, 0.0078125
    %v636 = vmul.f32 %v632, 0.0078125
    %v637 = vmul.f32 %v633, 0.0078125
    %v638 = vmax.f32 %v634, 0.0
    %v639 = vmax.f32 %v635, 0.0
    %v640 = vmax.f32 %v636, 0.0
    %v641 = vmax.f32 %v637, 0.0
    %v642 = vlaneseq
    %v643 = vand.u32 %v642, 127
    %v644 = vadd.s32 %v643, 128
    %v645 = vadd.s32 %v643, 256
    %v646 = vadd.s32 %v643, 384
    %s647 = sld [smem:[#allocation2]]
    %v648 = vstv %s647
    %vm649 = vcmp.eq.s32.totalorder %v643, %v648
    %vm650 = vcmp.eq.s32.totalorder %v644, %v648
    %vm651 = vcmp.eq.s32.totalorder %v645, %v648
    %vm652 = vcmp.eq.s32.totalorder %v646, %v648
    %v653 = vsel %vm649, 1, 0
    %v654 = vsel %vm650, 1, 0
    %v655 = vsel %vm651, 1, 0
    %v656 = vsel %vm652, 1, 0
    %v657 = vcvt.s32.f32 %v653
    %v658 = vcvt.s32.f32 %v654
    %v659 = vcvt.s32.f32 %v655
    %v660 = vcvt.s32.f32 %v656
    %s661 = sld [smem:[#allocation2 + $0x1]]
    %v662 = vstv %s661
    %vm663 = vcmp.eq.s32.totalorder %v643, %v662
    %vm664 = vcmp.eq.s32.totalorder %v644, %v662
    %vm665 = vcmp.eq.s32.totalorder %v645, %v662
    %vm666 = vcmp.eq.s32.totalorder %v646, %v662
    %v667 = vsel %vm663, 1, 0
    %v668 = vsel %vm664, 1, 0
    %v669 = vsel %vm665, 1, 0
    %v670 = vsel %vm666, 1, 0
    %v671 = vcvt.s32.f32 %v667
    %v672 = vcvt.s32.f32 %v668
    %v673 = vcvt.s32.f32 %v669
    %v674 = vcvt.s32.f32 %v670
    %s675 = sld [smem:[#allocation2 + $0x2]]
    %v676 = vstv %s675
    %vm677 = vcmp.eq.s32.totalorder %v643, %v676
    %vm678 = vcmp.eq.s32.totalorder %v644, %v676
    %vm679 = vcmp.eq.s32.totalorder %v645, %v676
    %vm680 = vcmp.eq.s32.totalorder %v646, %v676
    %v681 = vsel %vm677, 1, 0
    %v682 = vsel %vm678, 1, 0
    %v683 = vsel %vm679, 1, 0
    %v684 = vsel %vm680, 1, 0
    %v685 = vcvt.s32.f32 %v681
    %v686 = vcvt.s32.f32 %v682
    %v687 = vcvt.s32.f32 %v683
    %v688 = vcvt.s32.f32 %v684
    %s689 = sld [smem:[#allocation2 + $0x3]]
    %v690 = vstv %s689
    %vm691 = vcmp.eq.s32.totalorder %v643, %v690
    %vm692 = vcmp.eq.s32.totalorder %v644, %v690
    %vm693 = vcmp.eq.s32.totalorder %v645, %v690
    %vm694 = vcmp.eq.s32.totalorder %v646, %v690
    %v695 = vsel %vm691, 1, 0
    %v696 = vsel %vm692, 1, 0
    %v697 = vsel %vm693, 1, 0
    %v698 = vsel %vm694, 1, 0
    %v699 = vcvt.s32.f32 %v695
    %v700 = vcvt.s32.f32 %v696
    %v701 = vcvt.s32.f32 %v697
    %v702 = vcvt.s32.f32 %v698
    %s703 = sld [smem:[#allocation2 + $0x4]]
    %v704 = vstv %s703
    %vm705 = vcmp.eq.s32.totalorder %v643, %v704
    %vm706 = vcmp.eq.s32.totalorder %v644, %v704
    %vm707 = vcmp.eq.s32.totalorder %v645, %v704
    %vm708 = vcmp.eq.s32.totalorder %v646, %v704
    %v709 = vsel %vm705, 1, 0
    %v710 = vsel %vm706, 1, 0
    %v711 = vsel %vm707, 1, 0
    %v712 = vsel %vm708, 1, 0
    %v713 = vcvt.s32.f32 %v709
    %v714 = vcvt.s32.f32 %v710
    %v715 = vcvt.s32.f32 %v711
    %v716 = vcvt.s32.f32 %v712
    %s717 = sld [smem:[#allocation2 + $0x5]]
    %v718 = vstv %s717
    %vm719 = vcmp.eq.s32.totalorder %v643, %v718
    %vm720 = vcmp.eq.s32.totalorder %v644, %v718
    %vm721 = vcmp.eq.s32.totalorder %v645, %v718
    %vm722 = vcmp.eq.s32.totalorder %v646, %v718
    %v723 = vsel %vm719, 1, 0
    %v724 = vsel %vm720, 1, 0
    %v725 = vsel %vm721, 1, 0
    %v726 = vsel %vm722, 1, 0
    %v727 = vcvt.s32.f32 %v723
    %v728 = vcvt.s32.f32 %v724
    %v729 = vcvt.s32.f32 %v725
    %v730 = vcvt.s32.f32 %v726
    %s731 = sld [smem:[#allocation2 + $0x6]]
    %v732 = vstv %s731
    %vm733 = vcmp.eq.s32.totalorder %v643, %v732
    %vm734 = vcmp.eq.s32.totalorder %v644, %v732
    %vm735 = vcmp.eq.s32.totalorder %v645, %v732
    %vm736 = vcmp.eq.s32.totalorder %v646, %v732
    %v737 = vsel %vm733, 1, 0
    %v738 = vsel %vm734, 1, 0
    %v739 = vsel %vm735, 1, 0
    %v740 = vsel %vm736, 1, 0
    %v741 = vcvt.s32.f32 %v737
    %v742 = vcvt.s32.f32 %v738
    %v743 = vcvt.s32.f32 %v739
    %v744 = vcvt.s32.f32 %v740
    %s745 = sld [smem:[#allocation2 + $0x7]]
    %v746 = vstv %s745
    %vm747 = vcmp.eq.s32.totalorder %v643, %v746
    %vm748 = vcmp.eq.s32.totalorder %v644, %v746
    %vm749 = vcmp.eq.s32.totalorder %v645, %v746
    %vm750 = vcmp.eq.s32.totalorder %v646, %v746
    %v751 = vsel %vm747, 1, 0
    %v752 = vsel %vm748, 1, 0
    %v753 = vsel %vm749, 1, 0
    %v754 = vsel %vm750, 1, 0
    %v755 = vcvt.s32.f32 %v751
    %v756 = vcvt.s32.f32 %v752
    %v757 = vcvt.s32.f32 %v753
    %v758 = vcvt.s32.f32 %v754
    %v759 = vsel %vm121, %v657, %v671
    %v760 = vsel %vm121, %v658, %v672
    %v761 = vsel %vm121, %v659, %v673
    %v762 = vsel %vm121, %v660, %v674
    %vm763 = vcmask 1041408
    %v764 = vsel %vm763, %v759, %v685
    %v765 = vsel %vm763, %v760, %v686
    %v766 = vsel %vm763, %v761, %v687
    %v767 = vsel %vm763, %v762, %v688
    %vm768 = vcmask 1042432
    %v769 = vsel %vm768, %v764, %v699
    %v770 = vsel %vm768, %v765, %v700
    %v771 = vsel %vm768, %v766, %v701
    %v772 = vsel %vm768, %v767, %v702
    %vm773 = vcmask 1043456
    %v774 = vsel %vm773, %v769, %v713
    %v775 = vsel %vm773, %v770, %v714
    %v776 = vsel %vm773, %v771, %v715
    %v777 = vsel %vm773, %v772, %v716
    %vm778 = vcmask 1044480
    %v779 = vsel %vm778, %v774, %v727
    %v780 = vsel %vm778, %v775, %v728
    %v781 = vsel %vm778, %v776, %v729
    %v782 = vsel %vm778, %v777, %v730
    %vm783 = vcmask 1045504
    %v784 = vsel %vm783, %v779, %v741
    %v785 = vsel %vm783, %v780, %v742
    %v786 = vsel %vm783, %v781, %v743
    %v787 = vsel %vm783, %v782, %v744
    %vm788 = vcmask 1046528
    %v789 = vsel %vm788, %v784, %v755
    %v790 = vsel %vm788, %v785, %v756
    %v791 = vsel %vm788, %v786, %v757
    %v792 = vsel %vm788, %v787, %v758
    %v793 = vmul.f32 %v638, %v789
    %v794 = vmul.f32 %v639, %v790
    %v795 = vmul.f32 %v640, %v791
    %v796 = vmul.f32 %v641, %v792
    %v797 = vadd.f32 %v793, %v794
    %v798 = vadd.f32 %v797, %v795
    %v799 = vadd.f32 %v798, %v796
    %800 = vadd.xlane.f32.xlu0 %v799
    %v801 = vpop.xlane.xlu0 %800
    %v802 = vsub.f32 %v801, %v638
    %v803 = vsub.f32 %v801, %v639
    %v804 = vsub.f32 %v801, %v640
    %v805 = vsub.f32 %v801, %v641
    %v806 = vmax.f32 %v802, 0.0
    %v807 = vmax.f32 %v803, 0.0
    %v808 = vmax.f32 %v804, 0.0
    %v809 = vmax.f32 %v805, 0.0
    %v810 = vadd.f32 %v806, %v807
    %v811 = vadd.f32 %v810, %v808
    %v812 = vadd.f32 %v811, %v809
    %813 = vadd.xlane.f32.xlu0 %v812
    %v814 = vpop.xlane.xlu0 %813
    %v815 = vrot.slane %v814, 4
    %v816 = vadd.f32 %v814, %v815
    %v817 = vrot.slane %v816, 2
    %v818 = vadd.f32 %v816, %v817
    %v819 = vrot.slane %v818, 1
    %v820 = vadd.f32 %v818, %v819
    %s821 = vtos %v820
    %vm822 = vcmp.ge.f32.partialorder %v802, 0.0
    %vm823 = vcmp.ge.f32.partialorder %v803, 0.0
    %vm824 = vcmp.ge.f32.partialorder %v804, 0.0
    %vm825 = vcmp.ge.f32.partialorder %v805, 0.0
    %v826 = vsel %vm822, 1, 0
    %v827 = vsel %vm823, 1, 0
    %v828 = vsel %vm824, 1, 0
    %v829 = vsel %vm825, 1, 0
    %v830 = vcvt.s32.f32 %v826
    %v831 = vcvt.s32.f32 %v827
    %v832 = vcvt.s32.f32 %v828
    %v833 = vcvt.s32.f32 %v829
    %v834 = vadd.f32 %v830, %v831
    %v835 = vadd.f32 %v834, %v832
    %v836 = vadd.f32 %v835, %v833
    %837 = vadd.xlane.f32.xlu0 %v836
    %v838 = vpop.xlane.xlu0 %837
    %v839 = vrot.slane %v838, 4
    %v840 = vadd.f32 %v838, %v839
    %v841 = vrot.slane %v840, 2
    %v842 = vadd.f32 %v840, %v841
    %v843 = vrot.slane %v842, 1
    %v844 = vadd.f32 %v842, %v843
    %s845 = vtos %v844
    %vm846 = vcmask 7168
    %v847 = vsel %vm846, %v801, 0.0
    %848 = vadd.xlane.f32.xlu0 %v847
    %v849 = vpop.xlane.xlu0 %848
    %v850 = vrot.slane %v849, 4
    %v851 = vadd.f32 %v849, %v850
    %v852 = vrot.slane %v851, 2
    %v853 = vadd.f32 %v851, %v852
    %v854 = vrot.slane %v853, 1
    %v855 = vadd.f32 %v853, %v854
    %s856 = vtos %v855
    %s857 = smul.f32 %s856, 0.125
    %s858 = scalar_lea.smem [#allocation9], 0
    %859 = sst [smem:[%s858]] %s857
    %v860 = vstv %s845
    %v861 = vrcp.pop %v860
    %s862 = vtos %v861
    %s863 = smul.f32 %s821, %s862
    %s864 = scalar_lea.smem [#allocation9], 1
    %865 = sst [smem:[%s864]] %s863
    // Predicated region
    $region30: #{tpu_custom_call.1} parent=1 // pred_check
      _
    $region31: #{tpu_custom_call.1} parent=1 // pred_check_branch
      %867 = sbr.rel (0) target = $region33
    $region32: #{tpu_custom_call.1} parent=1 // pred_region
      %s869 = ssub.s32 16, 16
      %870 = vsyncadd [#allocation5], %s869
      %873 = dma.smem_to_hbm [#allocation9], 16, %s4, [#allocation5]
    $region33: #{tpu_custom_call.1} parent=1 // pred_fallthru
      _
    // Predicated region
    $region34: #{tpu_custom_call.1} parent=1 // pred_check
      _
    $region35: #{tpu_custom_call.1} parent=1 // pred_check_branch
      %875 = sbr.rel (0) target = $region37
    $region36: #{tpu_custom_call.1} parent=1 // pred_region
      %876 = dma.done [#allocation5], 16
    $region37: #{tpu_custom_call.1} parent=1 // pred_fallthru
      _
    %877 = sfence
    %878 = vsyncpa [#allocation3], 1
    %879 = vsyncpa [#allocation8], 1
    %880 = vsyncpa [#allocation4], 1
    %881 = vsyncpa [#allocation5], 1

</llo_original>
